<compile_context>
chip_gen: v6e
topology: v6e:2x2x1
jax: 0.10.0
libtpu: 0.0.40
codegen_flags: <defaults>
</compile_context>

<pallas_src>
import jax
import jax.numpy as jnp
from jax.experimental import pallas as pl
from jax.experimental.pallas import tpu as pltpu


def _critic_kernel(s_ref, a_ref, w1s_ref, w1a_ref, b1_ref,
                   w2_ref, b2_ref, wq_ref, bq_ref, out_ref):
    """One critic: (B, Ds), (B, Da) -> (B, 1) Q-values."""
    s = s_ref[...]
    a = a_ref[...]
    # fc1 + ReLU  (torch cat fused into two MXU matmuls)
    h1 = (jnp.dot(s, w1s_ref[...], preferred_element_type=jnp.float32)
          + jnp.dot(a, w1a_ref[...], preferred_element_type=jnp.float32)
          + b1_ref[...])
    h1 = jnp.maximum(h1, 0.0)
    # fc2 + ReLU
    h2 = jnp.dot(h1, w2_ref[...], preferred_element_type=jnp.float32) + b2_ref[...]
    h2 = jnp.maximum(h2, 0.0)
    # q head (fc2 -> 1) on VPU + XLU: (B, F2) * (1, F2) -> lane-sum -> (B, 1)
    # (an N=1 MXU matmul would waste all but one MXU column)
    q = jnp.sum(h2 * wq_ref[...], axis=-1, keepdims=True) + bq_ref[...]
    out_ref[...] = q.astype(out_ref.dtype)


def critic_forward_stacked(state, action, params):
    """Evaluate E stacked critics (leading axis on every param) in one launch.

    state: (B, Ds), action: (B, Da) shared by all critics (MADDPG centralized
    critics all see the same joint state / joint action).
    Returns (E, B, 1).
    """
    w1s, w1a, b1, w2, b2, wq, bq = params
    E, Ds, F1 = w1s.shape
    Da = w1a.shape[1]
    F2 = w2.shape[2]
    B = state.shape[0]

    def shared(shape):                       # same block every grid step
        return pl.BlockSpec(shape, lambda e: (0,) * len(shape))

    def per_critic(*dims):                   # leading E dim squeezed out
        return pl.BlockSpec((None, *dims), lambda e: (e,) + (0,) * len(dims))

    return pl.pallas_call(
        _critic_kernel,
        out_shape=jax.ShapeDtypeStruct((E, B, 1), jnp.float32),
        grid=(E,),
        in_specs=[
            shared((B, Ds)),        # state
            shared((B, Da)),        # action
            per_critic(Ds, F1),     # w1_state
            per_critic(Da, F1),     # w1_action
            per_critic(1, F1),      # b1
            per_critic(F1, F2),     # w2
            per_critic(1, F2),      # b2
            per_critic(1, F2),      # wq (stored as a row for the VPU head)
            per_critic(1, 1),       # bq
        ],
        out_specs=per_critic(B, 1),
        compiler_params=pltpu.CompilerParams(
            dimension_semantics=("parallel",)),   # shard critics across TCs
    )(state, action, w1s, w1a, b1, w2, b2, wq, bq)


def critic_forward(state, action, params):
    """Pallas equivalent of CriticNetwork.forward(state, action) -> (B, 1)."""
    stacked = tuple(p[None] for p in params)
    return critic_forward_stacked(state, action, stacked)[0]


def init_params(key, input_dims, fc1_dims, fc2_dims, n_agents, n_actions):
    """nn.Linear-style init U(-1/sqrt(fan_in), 1/sqrt(fan_in)).

    fc1's weight is kept pre-split into a state part and an action part so the
    torch `cat((state, action))` never has to be materialized. wq is stored as
    a (1, fc2) row for the VPU q-head."""
    d_state = input_dims
    d_action = n_agents * n_actions
    d_in = d_state + d_action
    keys = jax.random.split(key, 6)

    def uniform(k, shape, fan_in):
        bound = 1.0 / jnp.sqrt(jnp.float32(fan_in))
        return jax.random.uniform(k, shape, jnp.float32, -bound, bound)

    w1 = uniform(keys[0], (d_in, fc1_dims), d_in)
    w1s, w1a = w1[:d_state], w1[d_state:]
    b1 = uniform(keys[1], (1, fc1_dims), d_in)
    w2 = uniform(keys[2], (fc1_dims, fc2_dims), fc1_dims)
    b2 = uniform(keys[3], (1, fc2_dims), fc1_dims)
    wq = uniform(keys[4], (1, fc2_dims), fc2_dims)
    bq = uniform(keys[5], (1, 1), fc2_dims)
    return (w1s, w1a, b1, w2, b2, wq, bq)


def stack_params(param_list):
    """Stack a list of per-critic param tuples along a new leading axis."""
    return tuple(jnp.stack(ps) for ps in zip(*param_list))


def reference_forward(state, action, params):
    """Pure-JAX reference of the original torch forward."""
    w1s, w1a, b1, w2, b2, wq, bq = params
    x = jnp.concatenate([state, action], axis=-1)
    w1 = jnp.concatenate([w1s, w1a], axis=0)
    h1 = jnp.maximum(x @ w1 + b1, 0.0)
    h2 = jnp.maximum(h1 @ w2 + b2, 0.0)
    return h2 @ wq.T + bq


if __name__ == "__main__":
    # Small MADDPG-style shapes (hidden dims lane-aligned to 128).
    batch = 8
    input_dims = 24        # joint state dim
    n_agents = 3
    n_actions = 4          # per-agent action dim
    fc1_dims = 128
    fc2_dims = 128

    key = jax.random.PRNGKey(0)
    k_state, k_action, k_params = jax.random.split(key, 3)

    state = jax.random.normal(k_state, (batch, input_dims), jnp.float32)
    action = jax.random.normal(k_action, (batch, n_agents * n_actions), jnp.float32)

    # One critic per agent, all evaluated in a single pallas_call.
    per_agent_params = [
        init_params(k, input_dims, fc1_dims, fc2_dims, n_agents, n_actions)
        for k in jax.random.split(k_params, n_agents)
    ]
    stacked_params = stack_params(per_agent_params)

    q_all = jax.block_until_ready(
        critic_forward_stacked(state, action, stacked_params))
    assert q_all.shape == (n_agents, batch, 1)

    # Module-equivalent single-critic API (agent 0).
    q0 = jax.block_until_ready(critic_forward(state, action, per_agent_params[0]))
    assert q0.shape == (batch, 1)

    # Pure-JAX reference checks.
    for i, p in enumerate(per_agent_params):
        q_ref = reference_forward(state, action, p)
        assert jnp.allclose(q_all[i], q_ref, atol=1e-5, rtol=1e-5)
    assert jnp.allclose(q0, q_all[0], atol=1e-6, rtol=1e-6)

    print("KERNEL_OK")
</pallas_src>

<mosaic_0001>
module attributes {stable_mosaic.version = 11 : i64} {
  func.func @_critic_kernel(%arg0: i32, %arg1: memref<8x24xf32, #tpu.memory_space<vmem>>, %arg2: memref<8x12xf32, #tpu.memory_space<vmem>>, %arg3: memref<1x24x128xf32, #tpu.memory_space<vmem>>, %arg4: memref<1x12x128xf32, #tpu.memory_space<vmem>>, %arg5: memref<1x1x128xf32, #tpu.memory_space<vmem>>, %arg6: memref<1x128x128xf32, #tpu.memory_space<vmem>>, %arg7: memref<1x1x128xf32, #tpu.memory_space<vmem>>, %arg8: memref<1x1x128xf32, #tpu.memory_space<vmem>>, %arg9: memref<1x1x1xf32, #tpu.memory_space<vmem>>, %arg10: memref<1x8x1xf32, #tpu.memory_space<vmem>>) attributes {dimension_semantics = [#tpu.dimension_semantics<parallel>], iteration_bounds = array<i64: 3>, scalar_prefetch = 0 : i64, scratch_operands = 0 : i64, tpu.core_type = #tpu.core_type<tc>, window_params = [{pipeline_mode = #tpu.pipeline_mode<synchronous>, transform_indices = @transform_0, window_bounds = array<i64: 8, 24>}, {pipeline_mode = #tpu.pipeline_mode<synchronous>, transform_indices = @transform_1, window_bounds = array<i64: 8, 12>}, {transform_indices = @transform_2, window_bounds = array<i64: 1, 24, 128>}, {transform_indices = @transform_3, window_bounds = array<i64: 1, 12, 128>}, {transform_indices = @transform_4, window_bounds = array<i64: 1, 1, 128>}, {transform_indices = @transform_5, window_bounds = array<i64: 1, 128, 128>}, {transform_indices = @transform_6, window_bounds = array<i64: 1, 1, 128>}, {transform_indices = @transform_7, window_bounds = array<i64: 1, 1, 128>}, {transform_indices = @transform_8, window_bounds = array<i64: 1, 1, 1>}, {transform_indices = @transform_9, window_bounds = array<i64: 1, 8, 1>}]} {
    %c0 = arith.constant 0 : index
    %c0_0 = arith.constant 0 : index
    %0 = vector.load %arg1[%c0, %c0_0] : memref<8x24xf32, #tpu.memory_space<vmem>>, vector<8x24xf32>
    %c0_1 = arith.constant 0 : index
    %c0_2 = arith.constant 0 : index
    %1 = vector.load %arg2[%c0_1, %c0_2] : memref<8x12xf32, #tpu.memory_space<vmem>>, vector<8x12xf32>
    %c0_3 = arith.constant 0 : index
    %c0_4 = arith.constant 0 : index
    %c0_5 = arith.constant 0 : index
    %2 = vector.load %arg3[%c0_3, %c0_4, %c0_5] : memref<1x24x128xf32, #tpu.memory_space<vmem>>, vector<1x24x128xf32>
    %3 = vector.shape_cast %2 : vector<1x24x128xf32> to vector<24x128xf32>
    %cst = arith.constant dense<0.000000e+00> : vector<8x128xf32>
    %4 = tpu.matmul %0, %3, %cst {dimension_numbers = #tpu.dot_dimension_numbers<[1], [0], [0], [1], [0, 0, 1, 1], [], []>} : vector<8x24xf32>, vector<24x128xf32>, vector<8x128xf32> -> vector<8x128xf32>
    %c0_6 = arith.constant 0 : index
    %c0_7 = arith.constant 0 : index
    %c0_8 = arith.constant 0 : index
    %5 = vector.load %arg4[%c0_6, %c0_7, %c0_8] : memref<1x12x128xf32, #tpu.memory_space<vmem>>, vector<1x12x128xf32>
    %6 = vector.shape_cast %5 : vector<1x12x128xf32> to vector<12x128xf32>
    %cst_9 = arith.constant dense<0.000000e+00> : vector<8x128xf32>
    %7 = tpu.matmul %1, %6, %cst_9 {dimension_numbers = #tpu.dot_dimension_numbers<[1], [0], [0], [1], [0, 0, 1, 1], [], []>} : vector<8x12xf32>, vector<12x128xf32>, vector<8x128xf32> -> vector<8x128xf32>
    %8 = arith.addf %4, %7 : vector<8x128xf32>
    %c0_10 = arith.constant 0 : index
    %c0_11 = arith.constant 0 : index
    %c0_12 = arith.constant 0 : index
    %9 = vector.load %arg5[%c0_10, %c0_11, %c0_12] : memref<1x1x128xf32, #tpu.memory_space<vmem>>, vector<1x1x128xf32>
    %10 = vector.shape_cast %9 : vector<1x1x128xf32> to vector<1x128xf32>
    %11 = vector.broadcast %10 : vector<1x128xf32> to vector<8x128xf32>
    %12 = arith.addf %8, %11 : vector<8x128xf32>
    %cst_13 = arith.constant 0.000000e+00 : f32
    %13 = vector.broadcast %cst_13 : f32 to vector<8x128xf32>
    %14 = arith.maximumf %12, %13 : vector<8x128xf32>
    %c0_14 = arith.constant 0 : index
    %c0_15 = arith.constant 0 : index
    %c0_16 = arith.constant 0 : index
    %15 = vector.load %arg6[%c0_14, %c0_15, %c0_16] : memref<1x128x128xf32, #tpu.memory_space<vmem>>, vector<1x128x128xf32>
    %16 = vector.shape_cast %15 : vector<1x128x128xf32> to vector<128x128xf32>
    %cst_17 = arith.constant dense<0.000000e+00> : vector<8x128xf32>
    %17 = tpu.matmul %14, %16, %cst_17 {dimension_numbers = #tpu.dot_dimension_numbers<[1], [0], [0], [1], [0, 0, 1, 1], [], []>} : vector<8x128xf32>, vector<128x128xf32>, vector<8x128xf32> -> vector<8x128xf32>
    %c0_18 = arith.constant 0 : index
    %c0_19 = arith.constant 0 : index
    %c0_20 = arith.constant 0 : index
    %18 = vector.load %arg7[%c0_18, %c0_19, %c0_20] : memref<1x1x128xf32, #tpu.memory_space<vmem>>, vector<1x1x128xf32>
    %19 = vector.shape_cast %18 : vector<1x1x128xf32> to vector<1x128xf32>
    %20 = vector.broadcast %19 : vector<1x128xf32> to vector<8x128xf32>
    %21 = arith.addf %17, %20 : vector<8x128xf32>
    %cst_21 = arith.constant 0.000000e+00 : f32
    %22 = vector.broadcast %cst_21 : f32 to vector<8x128xf32>
    %23 = arith.maximumf %21, %22 : vector<8x128xf32>
    %c0_22 = arith.constant 0 : index
    %c0_23 = arith.constant 0 : index
    %c0_24 = arith.constant 0 : index
    %24 = vector.load %arg8[%c0_22, %c0_23, %c0_24] : memref<1x1x128xf32, #tpu.memory_space<vmem>>, vector<1x1x128xf32>
    %25 = vector.shape_cast %24 : vector<1x1x128xf32> to vector<1x128xf32>
    %26 = vector.broadcast %25 : vector<1x128xf32> to vector<8x128xf32>
    %27 = arith.mulf %23, %26 : vector<8x128xf32>
    %cst_25 = arith.constant dense<0.000000e+00> : vector<8xf32>
    %28 = vector.multi_reduction <add>, %27, %cst_25 [1] : vector<8x128xf32> to vector<8xf32>
    %29 = vector.shape_cast %28 : vector<8xf32> to vector<8x1xf32>
    %c0_26 = arith.constant 0 : index
    %c0_27 = arith.constant 0 : index
    %c0_28 = arith.constant 0 : index
    %30 = vector.load %arg9[%c0_26, %c0_27, %c0_28] : memref<1x1x1xf32, #tpu.memory_space<vmem>>, vector<1x1x1xf32>
    %31 = vector.shape_cast %30 : vector<1x1x1xf32> to vector<1x1xf32>
    %32 = vector.broadcast %31 : vector<1x1xf32> to vector<8x1xf32>
    %33 = arith.addf %29, %32 : vector<8x1xf32>
    %c0_29 = arith.constant 0 : index
    %c0_30 = arith.constant 0 : index
    %c0_31 = arith.constant 0 : index
    %34 = vector.load %arg10[%c0_29, %c0_30, %c0_31] : memref<1x8x1xf32, #tpu.memory_space<vmem>>, vector<1x8x1xf32>
    %35 = vector.shape_cast %34 : vector<1x8x1xf32> to vector<8x1xf32>
    %36 = vector.shape_cast %33 : vector<8x1xf32> to vector<1x8x1xf32>
    tpu.vector_store %arg10[%c0_29, %c0_30, %c0_31], %36 {strides = array<i32>} : memref<1x8x1xf32, #tpu.memory_space<vmem>>, vector<1x8x1xf32>,
    return
  }
  func.func @transform_0(%arg0: i32) -> (i32, i32) {
    %c0_i32 = arith.constant 0 : i32
    %c0_i32_0 = arith.constant 0 : i32
    %c0_i32_1 = arith.constant 0 : i32
    return %c0_i32, %c0_i32_0 : i32, i32
  }
  func.func @transform_1(%arg0: i32) -> (i32, i32) {
    %c0_i32 = arith.constant 0 : i32
    %c0_i32_0 = arith.constant 0 : i32
    %c0_i32_1 = arith.constant 0 : i32
    return %c0_i32, %c0_i32_0 : i32, i32
  }
  func.func @transform_2(%arg0: i32) -> (i32, i32, i32) {
    %c0_i32 = arith.constant 0 : i32
    %c0_i32_0 = arith.constant 0 : i32
    %c0_i32_1 = arith.constant 0 : i32
    return %arg0, %c0_i32, %c0_i32_0 : i32, i32, i32
  }
  func.func @transform_3(%arg0: i32) -> (i32, i32, i32) {
    %c0_i32 = arith.constant 0 : i32
    %c0_i32_0 = arith.constant 0 : i32
    %c0_i32_1 = arith.constant 0 : i32
    return %arg0, %c0_i32, %c0_i32_0 : i32, i32, i32
  }
  func.func @transform_4(%arg0: i32) -> (i32, i32, i32) {
    %c0_i32 = arith.constant 0 : i32
    %c0_i32_0 = arith.constant 0 : i32
    %c0_i32_1 = arith.constant 0 : i32
    return %arg0, %c0_i32, %c0_i32_0 : i32, i32, i32
  }
  func.func @transform_5(%arg0: i32) -> (i32, i32, i32) {
    %c0_i32 = arith.constant 0 : i32
    %c0_i32_0 = arith.constant 0 : i32
    %c0_i32_1 = arith.constant 0 : i32
    return %arg0, %c0_i32, %c0_i32_0 : i32, i32, i32
  }
  func.func @transform_6(%arg0: i32) -> (i32, i32, i32) {
    %c0_i32 = arith.constant 0 : i32
    %c0_i32_0 = arith.constant 0 : i32
    %c0_i32_1 = arith.constant 0 : i32
    return %arg0, %c0_i32, %c0_i32_0 : i32, i32, i32
  }
  func.func @transform_7(%arg0: i32) -> (i32, i32, i32) {
    %c0_i32 = arith.constant 0 : i32
    %c0_i32_0 = arith.constant 0 : i32
    %c0_i32_1 = arith.constant 0 : i32
    return %arg0, %c0_i32, %c0_i32_0 : i32, i32, i32
  }
  func.func @transform_8(%arg0: i32) -> (i32, i32, i32) {
    %c0_i32 = arith.constant 0 : i32
    %c0_i32_0 = arith.constant 0 : i32
    %c0_i32_1 = arith.constant 0 : i32
    return %arg0, %c0_i32, %c0_i32_0 : i32, i32, i32
  }
  func.func @transform_9(%arg0: i32) -> (i32, i32, i32) {
    %c0_i32 = arith.constant 0 : i32
    %c0_i32_0 = arith.constant 0 : i32
    %c0_i32_1 = arith.constant 0 : i32
    return %arg0, %c0_i32, %c0_i32_0 : i32, i32, i32
  }
}

</mosaic_0001>

<llo_original>
// kernel: tpu_custom_call.1
$region0: #{tpu_custom_call.1}
  #allocation0 [shape = 'u32[]', space=smem, size = 0x4, offset = 0x4, fixed_abs, tag = 'smem constant byte address 0x4 - core index']
  #allocation1 [shape = 'u32[144,128]{1,0:T(1,128)}', space=vmem, size = 0x12000, scoped, tag = 'internal scratch']
  %s0 = inlined_call_operand.hbm [shape: f32[8,24], index: 0, kind: input, shape index: {}]
  %s1 = inlined_call_operand.hbm [shape: f32[8,12], index: 1, kind: input, shape index: {}]
  %s2 = inlined_call_operand.hbm [shape: f32[3,24,128], index: 2, kind: input, shape index: {}]
  %s3 = inlined_call_operand.hbm [shape: f32[3,12,128], index: 3, kind: input, shape index: {}]
  %s4 = inlined_call_operand.vmem [shape: f32[3,1,128], index: 4, kind: input, shape index: {}]
  %s5 = inlined_call_operand.hbm [shape: f32[3,128,128], index: 5, kind: input, shape index: {}]
  %s6 = inlined_call_operand.vmem [shape: f32[3,1,128], index: 6, kind: input, shape index: {}]
  %s7 = inlined_call_operand.vmem [shape: f32[3,1,128], index: 7, kind: input, shape index: {}]
  %s8 = inlined_call_operand.vmem [shape: f32[3,1,1], index: 8, kind: input, shape index: {}]
  %s9 = inlined_call_operand.vmem [shape: f32[3,8,1], index: 9, kind: output, shape index: {}]
  %s10 = sld [smem:[#allocation0]]
  $region89: #{tpu_custom_call.1} parent=0
    _
  %s12 = ssub.s32 1, %s10
  %s13 = scalar_select 0, %s12, %s10
  $region1: #{tpu_custom_call.1} parent=0
    #allocation2 [shape = 'u8[4096]{0}', space=vmem, size = 0x1000, scoped, tag = 'input window, operand 0, single buffered']
    #allocation3 [shape = 's32[2]{0}', space=sflag, size = 0x8, scoped, tag = 'scoped memory for tpu_custom_call.1']
    #allocation4 [shape = 'u8[4096]{0}', space=vmem, size = 0x1000, scoped, tag = 'input window, operand 1, single buffered']
    #allocation5 [shape = 's32[1]{0}', space=sflag, size = 0x4, scoped, tag = 'scoped memory for tpu_custom_call.1']
    #allocation6 [shape = 'u8[24576]{0}', space=vmem, size = 0x6000, scoped, tag = 'input window, operand 2']
    #allocation7 [shape = 'u8[16384]{0}', space=vmem, size = 0x4000, scoped, tag = 'input window, operand 3']
    #allocation8 [shape = 'u8[131072]{0}', space=vmem, size = 0x20000, scoped, tag = 'input window, operand 5']
    %14 = vsyncpa [#allocation3], 0
    %15 = vsyncpa [#allocation5], 0
    loop: start=0, step=1, limit=5
    $region2: #{tpu_custom_call.1} parent=1 // loop_pre_header
      _
    $region3: #{tpu_custom_call.1} parent=1 // loop_header
      %s17 = sphi 0, %s21
      %p18 = scmp.ge.s32.totalorder %s17, 5
      %s25 = sphi 0, %s25
      %s27 = sphi 0, %s25
      %s28 = sphi 0, %s27
      %s42 = sphi 0, %s28
      %s46 = sphi 0, %s46
      %s48 = sphi 0, %s46
      %s49 = sphi 0, %s48
      %s63 = sphi 0, %s49
      %s69 = sphi 0, %s71
      %s72 = sphi 0, %s69
      %s73 = sphi 0, %s72
      %s89 = sphi 0, %s73
      %s95 = sphi 0, %s97
      %s98 = sphi 0, %s95
      %s99 = sphi 0, %s98
      %s115 = sphi 0, %s99
      %s121 = sphi 0, %s123
      %s124 = sphi 0, %s121
      %s125 = sphi 0, %s124
      %s141 = sphi 0, %s125
      %s147 = sphi 0, %s149
      %s150 = sphi 0, %s147
      %s151 = sphi 0, %s150
      %s167 = sphi 0, %s151
      %s173 = sphi 0, %s175
      %s176 = sphi 0, %s173
      %s177 = sphi 0, %s176
      %s193 = sphi 0, %s177
      %s199 = sphi 0, %s201
      %s202 = sphi 0, %s199
      %s203 = sphi 0, %s202
      %s219 = sphi 0, %s203
      %s225 = sphi 0, %s227
      %s228 = sphi 0, %s225
      %s229 = sphi 0, %s228
      %s245 = sphi 0, %s229
      %s251 = sphi 0, %s253
      %s254 = sphi 0, %s251
      %s255 = sphi 0, %s254
      %s271 = sphi 0, %s255
    $region4: #{tpu_custom_call.1} parent=1 // loop_header_branch
      %20 = sbr.rel (%p18) target = $region8
    $region5: #{tpu_custom_call.1} parent=1 // loop_body
      %s22 = ssub.s32 %s17, 1
      %s23 = ssub.s32 %s17, 2
      %s24 = sadd.s32 %s17, 1
      %s26 = sadd.s32 %s25, 1
      %p29 = scmp.eq.s32.totalorder %s17, 2
      %p30 = scmp.ne.s32.totalorder %s25, %s27
      %p31 = scmp.eq.s32.totalorder %s17, 0
      %p32 = por %p30, %p31
      %p33 = scmp.ne.s32.totalorder %s25, %s27
      %p34 = scmp.eq.s32.totalorder %s22, 2
      %p35 = por %p33, %p34
      %p36 = scmp.ne.s32.totalorder %s27, %s28
      %p37 = scmp.eq.s32.totalorder %s22, 0
      %p38 = por %p36, %p37
      %p39 = scmp.ne.s32.totalorder %s27, %s28
      %p40 = scmp.eq.s32.totalorder %s23, 2
      %p41 = por %p39, %p40
      %p43 = scmp.ne.s32.totalorder %s28, %s42
      %p44 = scmp.eq.s32.totalorder %s23, 0
      %p45 = por %p43, %p44
      %s47 = sadd.s32 %s46, 1
      %p50 = scmp.eq.s32.totalorder %s17, 2
      %p51 = scmp.ne.s32.totalorder %s46, %s48
      %p52 = scmp.eq.s32.totalorder %s17, 0
      %p53 = por %p51, %p52
      %p54 = scmp.ne.s32.totalorder %s46, %s48
      %p55 = scmp.eq.s32.totalorder %s22, 2
      %p56 = por %p54, %p55
      %p57 = scmp.ne.s32.totalorder %s48, %s49
      %p58 = scmp.eq.s32.totalorder %s22, 0
      %p59 = por %p57, %p58
      %p60 = scmp.ne.s32.totalorder %s48, %s49
      %p61 = scmp.eq.s32.totalorder %s23, 2
      %p62 = por %p60, %p61
      %p64 = scmp.ne.s32.totalorder %s49, %s63
      %p65 = scmp.eq.s32.totalorder %s23, 0
      %p66 = por %p64, %p65
      %s67 = ssub.s32 %s17, %s24
      %p68 = scmp.eq.s32.totalorder %s67, 0
      %s70 = sadd.s32 %s69, 1
      %s71 = scalar_select %p68, %s69, %s70
      %p74 = pneg %p68
      %p75 = scmp.eq.s32.totalorder %s17, 2
      %p76 = por %p74, %p75
      %p77 = scmp.ne.s32.totalorder %s69, %s72
      %p78 = scmp.eq.s32.totalorder %s17, 0
      %p79 = por %p77, %p78
      %p80 = scmp.ne.s32.totalorder %s69, %s72
      %p81 = scmp.eq.s32.totalorder %s22, 2
      %p82 = por %p80, %p81
      %p83 = scmp.ne.s32.totalorder %s72, %s73
      %p84 = scmp.eq.s32.totalorder %s22, 0
      %p85 = por %p83, %p84
      %p86 = scmp.ne.s32.totalorder %s72, %s73
      %p87 = scmp.eq.s32.totalorder %s23, 2
      %p88 = por %p86, %p87
      %p90 = scmp.ne.s32.totalorder %s73, %s89
      %p91 = scmp.eq.s32.totalorder %s23, 0
      %p92 = por %p90, %p91
      %s93 = ssub.s32 %s17, %s24
      %p94 = scmp.eq.s32.totalorder %s93, 0
      %s96 = sadd.s32 %s95, 1
      %s97 = scalar_select %p94, %s95, %s96
      %p100 = pneg %p94
      %p101 = scmp.eq.s32.totalorder %s17, 2
      %p102 = por %p100, %p101
      %p103 = scmp.ne.s32.totalorder %s95, %s98
      %p104 = scmp.eq.s32.totalorder %s17, 0
      %p105 = por %p103, %p104
      %p106 = scmp.ne.s32.totalorder %s95, %s98
      %p107 = scmp.eq.s32.totalorder %s22, 2
      %p108 = por %p106, %p107
      %p109 = scmp.ne.s32.totalorder %s98, %s99
      %p110 = scmp.eq.s32.totalorder %s22, 0
      %p111 = por %p109, %p110
      %p112 = scmp.ne.s32.totalorder %s98, %s99
      %p113 = scmp.eq.s32.totalorder %s23, 2
      %p114 = por %p112, %p113
      %p116 = scmp.ne.s32.totalorder %s99, %s115
      %p117 = scmp.eq.s32.totalorder %s23, 0
      %p118 = por %p116, %p117
      %s119 = ssub.s32 %s17, %s24
      %p120 = scmp.eq.s32.totalorder %s119, 0
      %s122 = sadd.s32 %s121, 1
      %s123 = scalar_select %p120, %s121, %s122
      %p126 = pneg %p120
      %p127 = scmp.eq.s32.totalorder %s17, 2
      %p128 = por %p126, %p127
      %p129 = scmp.ne.s32.totalorder %s121, %s124
      %p130 = scmp.eq.s32.totalorder %s17, 0
      %p131 = por %p129, %p130
      %p132 = scmp.ne.s32.totalorder %s121, %s124
      %p133 = scmp.eq.s32.totalorder %s22, 2
      %p134 = por %p132, %p133
      %p135 = scmp.ne.s32.totalorder %s124, %s125
      %p136 = scmp.eq.s32.totalorder %s22, 0
      %p137 = por %p135, %p136
      %p138 = scmp.ne.s32.totalorder %s124, %s125
      %p139 = scmp.eq.s32.totalorder %s23, 2
      %p140 = por %p138, %p139
      %p142 = scmp.ne.s32.totalorder %s125, %s141
      %p143 = scmp.eq.s32.totalorder %s23, 0
      %p144 = por %p142, %p143
      %s145 = ssub.s32 %s17, %s24
      %p146 = scmp.eq.s32.totalorder %s145, 0
      %s148 = sadd.s32 %s147, 1
      %s149 = scalar_select %p146, %s147, %s148
      %p152 = pneg %p146
      %p153 = scmp.eq.s32.totalorder %s17, 2
      %p154 = por %p152, %p153
      %p155 = scmp.ne.s32.totalorder %s147, %s150
      %p156 = scmp.eq.s32.totalorder %s17, 0
      %p157 = por %p155, %p156
      %p158 = scmp.ne.s32.totalorder %s147, %s150
      %p159 = scmp.eq.s32.totalorder %s22, 2
      %p160 = por %p158, %p159
      %p161 = scmp.ne.s32.totalorder %s150, %s151
      %p162 = scmp.eq.s32.totalorder %s22, 0
      %p163 = por %p161, %p162
      %p164 = scmp.ne.s32.totalorder %s150, %s151
      %p165 = scmp.eq.s32.totalorder %s23, 2
      %p166 = por %p164, %p165
      %p168 = scmp.ne.s32.totalorder %s151, %s167
      %p169 = scmp.eq.s32.totalorder %s23, 0
      %p170 = por %p168, %p169
      %s171 = ssub.s32 %s17, %s24
      %p172 = scmp.eq.s32.totalorder %s171, 0
      %s174 = sadd.s32 %s173, 1
      %s175 = scalar_select %p172, %s173, %s174
      %p178 = pneg %p172
      %p179 = scmp.eq.s32.totalorder %s17, 2
      %p180 = por %p178, %p179
      %p181 = scmp.ne.s32.totalorder %s173, %s176
      %p182 = scmp.eq.s32.totalorder %s17, 0
      %p183 = por %p181, %p182
      %p184 = scmp.ne.s32.totalorder %s173, %s176
      %p185 = scmp.eq.s32.totalorder %s22, 2
      %p186 = por %p184, %p185
      %p187 = scmp.ne.s32.totalorder %s176, %s177
      %p188 = scmp.eq.s32.totalorder %s22, 0
      %p189 = por %p187, %p188
      %p190 = scmp.ne.s32.totalorder %s176, %s177
      %p191 = scmp.eq.s32.totalorder %s23, 2
      %p192 = por %p190, %p191
      %p194 = scmp.ne.s32.totalorder %s177, %s193
      %p195 = scmp.eq.s32.totalorder %s23, 0
      %p196 = por %p194, %p195
      %s197 = ssub.s32 %s17, %s24
      %p198 = scmp.eq.s32.totalorder %s197, 0
      %s200 = sadd.s32 %s199, 1
      %s201 = scalar_select %p198, %s199, %s200
      %p204 = pneg %p198
      %p205 = scmp.eq.s32.totalorder %s17, 2
      %p206 = por %p204, %p205
      %p207 = scmp.ne.s32.totalorder %s199, %s202
      %p208 = scmp.eq.s32.totalorder %s17, 0
      %p209 = por %p207, %p208
      %p210 = scmp.ne.s32.totalorder %s199, %s202
      %p211 = scmp.eq.s32.totalorder %s22, 2
      %p212 = por %p210, %p211
      %p213 = scmp.ne.s32.totalorder %s202, %s203
      %p214 = scmp.eq.s32.totalorder %s22, 0
      %p215 = por %p213, %p214
      %p216 = scmp.ne.s32.totalorder %s202, %s203
      %p217 = scmp.eq.s32.totalorder %s23, 2
      %p218 = por %p216, %p217
      %p220 = scmp.ne.s32.totalorder %s203, %s219
      %p221 = scmp.eq.s32.totalorder %s23, 0
      %p222 = por %p220, %p221
      %s223 = ssub.s32 %s17, %s24
      %p224 = scmp.eq.s32.totalorder %s223, 0
      %s226 = sadd.s32 %s225, 1
      %s227 = scalar_select %p224, %s225, %s226
      %p230 = pneg %p224
      %p231 = scmp.eq.s32.totalorder %s17, 2
      %p232 = por %p230, %p231
      %p233 = scmp.ne.s32.totalorder %s225, %s228
      %p234 = scmp.eq.s32.totalorder %s17, 0
      %p235 = por %p233, %p234
      %p236 = scmp.ne.s32.totalorder %s225, %s228
      %p237 = scmp.eq.s32.totalorder %s22, 2
      %p238 = por %p236, %p237
      %p239 = scmp.ne.s32.totalorder %s228, %s229
      %p240 = scmp.eq.s32.totalorder %s22, 0
      %p241 = por %p239, %p240
      %p242 = scmp.ne.s32.totalorder %s228, %s229
      %p243 = scmp.eq.s32.totalorder %s23, 2
      %p244 = por %p242, %p243
      %p246 = scmp.ne.s32.totalorder %s229, %s245
      %p247 = scmp.eq.s32.totalorder %s23, 0
      %p248 = por %p246, %p247
      %s249 = ssub.s32 %s17, %s24
      %p250 = scmp.eq.s32.totalorder %s249, 0
      %s252 = sadd.s32 %s251, 1
      %s253 = scalar_select %p250, %s251, %s252
      %p256 = pneg %p250
      %p257 = scmp.eq.s32.totalorder %s17, 2
      %p258 = por %p256, %p257
      %p259 = scmp.ne.s32.totalorder %s251, %s254
      %p260 = scmp.eq.s32.totalorder %s17, 0
      %p261 = por %p259, %p260
      %p262 = scmp.ne.s32.totalorder %s251, %s254
      %p263 = scmp.eq.s32.totalorder %s22, 2
      %p264 = por %p262, %p263
      %p265 = scmp.ne.s32.totalorder %s254, %s255
      %p266 = scmp.eq.s32.totalorder %s22, 0
      %p267 = por %p265, %p266
      %p268 = scmp.ne.s32.totalorder %s254, %s255
      %p269 = scmp.eq.s32.totalorder %s23, 2
      %p270 = por %p268, %p269
      %p272 = scmp.ne.s32.totalorder %s255, %s271
      %p273 = scmp.eq.s32.totalorder %s23, 0
      %p274 = por %p272, %p273
      %p275 = scmp.le.s32.totalorder 1, %s17
      %p276 = scmp.lt.s32.totalorder %s17, 4
      %p277 = pnand %p275, %p276
      %p278 = pneg %p277
      // Predicated region
      $region9: #{tpu_custom_call.1} parent=5 // pred_check
        _
      $region10: #{tpu_custom_call.1} parent=5 // pred_check_branch
        %280 = sbr.rel (%p277) target = $region12
      $region11: #{tpu_custom_call.1} parent=5 // pred_region
        %s281 = ssub.s32 %s17, 1
        // Predicated region
        $region13: #{tpu_custom_call.1} parent=11 // pred_check
          %p282 = pneg %p38
        $region14: #{tpu_custom_call.1} parent=11 // pred_check_branch
          %284 = sbr.rel (%p282) target = $region16
        $region15: #{tpu_custom_call.1} parent=11 // pred_region
          %s286 = ssub.s32 128, 128
          %287 = vsyncadd [#allocation3], %s286
          %s289 = sshll.u32 [#allocation2], 4
          %s290 = int_to_ptr.vmem [resolvable:$true] %s289
          %292 = dma.hbm_to_vmem [thread:$0]  %s0, 128, %s290, [#allocation3]
        $region16: #{tpu_custom_call.1} parent=11 // pred_fallthru
          _
        // Predicated region
        $region17: #{tpu_custom_call.1} parent=11 // pred_check
          %p293 = pneg %p59
        $region18: #{tpu_custom_call.1} parent=11 // pred_check_branch
          %295 = sbr.rel (%p293) target = $region20
        $region19: #{tpu_custom_call.1} parent=11 // pred_region
          %s297 = ssub.s32 128, 128
          %298 = vsyncadd [#allocation5], %s297
          %s300 = sshll.u32 [#allocation4], 4
          %s301 = int_to_ptr.vmem [resolvable:$true] %s300
          %303 = dma.hbm_to_vmem [thread:$0]  %s1, 128, %s301, [#allocation5]
        $region20: #{tpu_custom_call.1} parent=11 // pred_fallthru
          _
      $region12: #{tpu_custom_call.1} parent=5 // pred_fallthru
        _
      %p304 = scmp.lt.s32.totalorder %s17, 3
      // Predicated region
      $region21: #{tpu_custom_call.1} parent=5 // pred_check
        %p305 = pneg %p304
      $region22: #{tpu_custom_call.1} parent=5 // pred_check_branch
        %307 = sbr.rel (%p305) target = $region24
      $region23: #{tpu_custom_call.1} parent=5 // pred_region
        // Predicated region
        $region25: #{tpu_custom_call.1} parent=23 // pred_check
          %p308 = pneg %p79
        $region26: #{tpu_custom_call.1} parent=23 // pred_check_branch
          %310 = sbr.rel (%p308) target = $region28
        $region27: #{tpu_custom_call.1} parent=23 // pred_region
          %s311 = sand.u32 %s17, 1
          %s312 = scalar_lea.sflag [#allocation3], %s311
          %s313 = sand.u32 %s69, 1
          %s314 = smul.addr %s313, 24
          %s315 = scalar_lea.vmem [#allocation6], %s314
          %s317 = ssub.s32 384, 384
          %318 = vsyncadd %s312, %s317
          %s319 = smul.addr %s17, 3
          %s320 = smul.addr %s319, 128
          %s321 = scalar_lea.hbm %s2, %s320
          %s322 = sshll.u32 %s315, 4
          %s323 = int_to_ptr.vmem [resolvable:$true] %s322
          %328 = dma.hbm_to_vmem [thread:$0]  %s321, 384, %s323, %s312, 128, 128, 8
        $region28: #{tpu_custom_call.1} parent=23 // pred_fallthru
          _
        // Predicated region
        $region29: #{tpu_custom_call.1} parent=23 // pred_check
          %p329 = pneg %p105
        $region30: #{tpu_custom_call.1} parent=23 // pred_check_branch
          %331 = sbr.rel (%p329) target = $region32
        $region31: #{tpu_custom_call.1} parent=23 // pred_region
          %s332 = sand.u32 %s17, 1
          %s333 = scalar_lea.sflag [#allocation3], %s332
          %s334 = sand.u32 %s95, 1
          %s335 = smul.addr %s334, 16
          %s336 = scalar_lea.vmem [#allocation7], %s335
          %s338 = ssub.s32 256, 256
          %339 = vsyncadd %s333, %s338
          %s340 = smul.addr %s17, 2
          %s341 = smul.addr %s340, 128
          %s342 = scalar_lea.hbm %s3, %s341
          %s343 = sshll.u32 %s336, 4
          %s344 = int_to_ptr.vmem [resolvable:$true] %s343
          %349 = dma.hbm_to_vmem [thread:$0]  %s342, 256, %s344, %s333, 128, 128, 8
        $region32: #{tpu_custom_call.1} parent=23 // pred_fallthru
          _
        // Predicated region
        $region33: #{tpu_custom_call.1} parent=23 // pred_check
          %p350 = pneg %p131
        $region34: #{tpu_custom_call.1} parent=23 // pred_check_branch
          %352 = sbr.rel (%p350) target = $region36
        $region35: #{tpu_custom_call.1} parent=23 // pred_region
          %p353 = scmp.lt.s32.totalorder %s17, 2
          %s354 = scalar_select %p353, %s17, 2
          %s355 = scalar_lea.vmem %s4, %s354
        $region36: #{tpu_custom_call.1} parent=23 // pred_fallthru
          _
        // Predicated region
        $region37: #{tpu_custom_call.1} parent=23 // pred_check
          %p356 = pneg %p157
        $region38: #{tpu_custom_call.1} parent=23 // pred_check_branch
          %358 = sbr.rel (%p356) target = $region40
        $region39: #{tpu_custom_call.1} parent=23 // pred_region
          %s359 = sand.u32 %s17, 1
          %s360 = scalar_lea.sflag [#allocation3], %s359
          %s361 = sand.u32 %s147, 1
          %s362 = smul.addr %s361, 128
          %s363 = scalar_lea.vmem [#allocation8], %s362
          %s365 = ssub.s32 2048, 2048
          %366 = vsyncadd %s360, %s365
          %s367 = smul.addr %s17, 16
          %s368 = smul.addr %s367, 128
          %s369 = scalar_lea.hbm %s5, %s368
          %s370 = sshll.u32 %s363, 4
          %s371 = int_to_ptr.vmem [resolvable:$true] %s370
          %376 = dma.hbm_to_vmem [thread:$0]  %s369, 2048, %s371, %s360, 128, 128, 8
        $region40: #{tpu_custom_call.1} parent=23 // pred_fallthru
          _
        // Predicated region
        $region41: #{tpu_custom_call.1} parent=23 // pred_check
          %p377 = pneg %p183
        $region42: #{tpu_custom_call.1} parent=23 // pred_check_branch
          %379 = sbr.rel (%p377) target = $region44
        $region43: #{tpu_custom_call.1} parent=23 // pred_region
          %p380 = scmp.lt.s32.totalorder %s17, 2
          %s381 = scalar_select %p380, %s17, 2
          %s382 = scalar_lea.vmem %s6, %s381
        $region44: #{tpu_custom_call.1} parent=23 // pred_fallthru
          _
        // Predicated region
        $region45: #{tpu_custom_call.1} parent=23 // pred_check
          %p383 = pneg %p209
        $region46: #{tpu_custom_call.1} parent=23 // pred_check_branch
          %385 = sbr.rel (%p383) target = $region48
        $region47: #{tpu_custom_call.1} parent=23 // pred_region
          %p386 = scmp.lt.s32.totalorder %s17, 2
          %s387 = scalar_select %p386, %s17, 2
          %s388 = scalar_lea.vmem %s7, %s387
        $region48: #{tpu_custom_call.1} parent=23 // pred_fallthru
          _
        // Predicated region
        $region49: #{tpu_custom_call.1} parent=23 // pred_check
          %p389 = pneg %p235
        $region50: #{tpu_custom_call.1} parent=23 // pred_check_branch
          %391 = sbr.rel (%p389) target = $region52
        $region51: #{tpu_custom_call.1} parent=23 // pred_region
          %p392 = scmp.lt.s32.totalorder %s17, 2
          %s393 = scalar_select %p392, %s17, 2
          %s394 = scalar_lea.vmem %s8, %s393
        $region52: #{tpu_custom_call.1} parent=23 // pred_fallthru
          _
      $region24: #{tpu_custom_call.1} parent=5 // pred_fallthru
        _
      %p395 = scmp.le.s32.totalorder 1, %s17
      %p396 = scmp.lt.s32.totalorder %s17, 4
      %p397 = pnand %p395, %p396
      %p398 = pneg %p397
      // Predicated region
      $region53: #{tpu_custom_call.1} parent=5 // pred_check
        _
      $region54: #{tpu_custom_call.1} parent=5 // pred_check_branch
        %400 = sbr.rel (%p397) target = $region56
      $region55: #{tpu_custom_call.1} parent=5 // pred_region
        %s401 = ssub.s32 %s17, 1
        // Predicated region
        $region57: #{tpu_custom_call.1} parent=55 // pred_check
          %p402 = pneg %p38
        $region58: #{tpu_custom_call.1} parent=55 // pred_check_branch
          %404 = sbr.rel (%p402) target = $region60
        $region59: #{tpu_custom_call.1} parent=55 // pred_region
          %405 = dma.done [#allocation3], 128
        $region60: #{tpu_custom_call.1} parent=55 // pred_fallthru
          _
        // Predicated region
        $region61: #{tpu_custom_call.1} parent=55 // pred_check
          %p406 = pneg %p59
        $region62: #{tpu_custom_call.1} parent=55 // pred_check_branch
          %408 = sbr.rel (%p406) target = $region64
        $region63: #{tpu_custom_call.1} parent=55 // pred_region
          %409 = dma.done [#allocation5], 128
        $region64: #{tpu_custom_call.1} parent=55 // pred_fallthru
          _
        %s410 = sand.u32 %s22, 1
        %s411 = scalar_lea.sflag [#allocation3], %s410
        %s412 = sand.u32 %s72, 1
        %s413 = smul.addr %s412, 24
        %s414 = scalar_lea.vmem [#allocation6], %s413
        // Predicated region
        $region65: #{tpu_custom_call.1} parent=55 // pred_check
          %p415 = pneg %p85
        $region66: #{tpu_custom_call.1} parent=55 // pred_check_branch
          %417 = sbr.rel (%p415) target = $region68
        $region67: #{tpu_custom_call.1} parent=55 // pred_region
          %418 = dma.done %s411, 384
        $region68: #{tpu_custom_call.1} parent=55 // pred_fallthru
          _
        %s419 = sand.u32 %s22, 1
        %s420 = scalar_lea.sflag [#allocation3], %s419
        %s421 = sand.u32 %s98, 1
        %s422 = smul.addr %s421, 16
        %s423 = scalar_lea.vmem [#allocation7], %s422
        // Predicated region
        $region69: #{tpu_custom_call.1} parent=55 // pred_check
          %p424 = pneg %p111
        $region70: #{tpu_custom_call.1} parent=55 // pred_check_branch
          %426 = sbr.rel (%p424) target = $region72
        $region71: #{tpu_custom_call.1} parent=55 // pred_region
          %427 = dma.done %s420, 256
        $region72: #{tpu_custom_call.1} parent=55 // pred_fallthru
          _
        %s428 = sand.u32 %s22, 1
        %s429 = scalar_lea.sflag [#allocation3], %s428
        %s430 = sand.u32 %s150, 1
        %s431 = smul.addr %s430, 128
        %s432 = scalar_lea.vmem [#allocation8], %s431
        // Predicated region
        $region73: #{tpu_custom_call.1} parent=55 // pred_check
          %p433 = pneg %p163
        $region74: #{tpu_custom_call.1} parent=55 // pred_check_branch
          %435 = sbr.rel (%p433) target = $region76
        $region75: #{tpu_custom_call.1} parent=55 // pred_region
          %436 = dma.done %s429, 2048
        $region76: #{tpu_custom_call.1} parent=55 // pred_fallthru
          _
        %p437 = pneg %p38
        %p438 = pneg %p35
        %p439 = pneg %p59
        %p440 = pneg %p56
        %s441 = sand.u32 %s22, 1
        %s442 = scalar_lea.sflag [#allocation3], %s441
        %s443 = sand.u32 %s72, 1
        %s444 = smul.addr %s443, 24
        %s445 = scalar_lea.vmem [#allocation6], %s444
        %p446 = pneg %p85
        %p447 = pneg %p82
        %s448 = sand.u32 %s22, 1
        %s449 = scalar_lea.sflag [#allocation3], %s448
        %s450 = sand.u32 %s98, 1
        %s451 = smul.addr %s450, 16
        %s452 = scalar_lea.vmem [#allocation7], %s451
        %p453 = pneg %p111
        %p454 = pneg %p108
        %p455 = scmp.lt.s32.totalorder %s22, 2
        %s456 = scalar_select %p455, %s22, 2
        %s457 = scalar_lea.vmem %s4, %s456
        %p458 = pneg %p137
        %p459 = pneg %p134
        %s460 = sand.u32 %s22, 1
        %s461 = scalar_lea.sflag [#allocation3], %s460
        %s462 = sand.u32 %s150, 1
        %s463 = smul.addr %s462, 128
        %s464 = scalar_lea.vmem [#allocation8], %s463
        %p465 = pneg %p163
        %p466 = pneg %p160
        %p467 = scmp.lt.s32.totalorder %s22, 2
        %s468 = scalar_select %p467, %s22, 2
        %s469 = scalar_lea.vmem %s6, %s468
        %p470 = pneg %p189
        %p471 = pneg %p186
        %p472 = scmp.lt.s32.totalorder %s22, 2
        %s473 = scalar_select %p472, %s22, 2
        %s474 = scalar_lea.vmem %s7, %s473
        %p475 = pneg %p215
        %p476 = pneg %p212
        %p477 = scmp.lt.s32.totalorder %s22, 2
        %s478 = scalar_select %p477, %s22, 2
        %s479 = scalar_lea.vmem %s8, %s478
        %p480 = pneg %p241
        %p481 = pneg %p238
        %p482 = pneg %p267
        %p483 = pneg %p264
        %p484 = scmp.lt.s32.totalorder %s22, 2
        %s485 = scalar_select %p484, %s22, 2
        %s486 = smul.addr %s485, 8
        %s487 = scalar_lea.vmem %s9, %s486
        %p488 = scmp.lt.s32.totalorder %s22, 2
        %s489 = scalar_select %p488, %s22, 2
        %s490 = scalar_lea.vmem %s4, %s489
        %p491 = scmp.lt.s32.totalorder %s22, 2
        %s492 = scalar_select %p491, %s22, 2
        %s493 = scalar_lea.vmem %s6, %s492
        %p494 = scmp.lt.s32.totalorder %s22, 2
        %s495 = scalar_select %p494, %s22, 2
        %s496 = scalar_lea.vmem %s7, %s495
        %p497 = scmp.lt.s32.totalorder %s22, 2
        %s498 = scalar_select %p497, %s22, 2
        %s499 = scalar_lea.vmem %s8, %s498
        %p500 = scmp.lt.s32.totalorder %s22, 2
        %s501 = scalar_select %p500, %s22, 2
        %s502 = smul.addr %s501, 8
        %s503 = scalar_lea.vmem %s9, %s502
        %v504 = vld [vmem:[#allocation2] sm:$0xff]
        %v505 = vld [vmem:[#allocation4] sm:$0xff]
        %v506 = vld [vmem:[%s414] sm:$0xff]
        %v507 = vld [vmem:[%s414 + $0x8] sm:$0xff]
        %v508 = vld [vmem:[%s414 + $0x10] sm:$0xff]
        %v509 = vld [vmem:[%s423] sm:$0xff]
        %v510 = vld [vmem:[%s423 + $0x8] sm:$0xf]
        %vm511 = vcmask 97280
        %v513 = vsel %vm511, %v505, 0
        %vm515 = vcmask 1043456
        %v517 = vsel %vm515, %v510, 0
        %519 = vmatprep.subr.mxu0 0.0
        %520 = vmatpush1.msra.mxu0 0.0
        %521 = vmatprep.subr.mxu0 0.0
        %522 = vmatpush1.msra.mxu0 0.0
        %523 = vmatprep.subr.mxu0 0.0
        %524 = vmatpush1.msra.mxu0 0.0
        %525 = vmatprep.subr.mxu0 0.0
        %526 = vmatpush1.msra.mxu0 0.0
        %527 = vmatprep.subr.mxu0 0.0
        %528 = vmatpush1.msra.mxu0 0.0
        %529 = vmatprep.subr.mxu0 0.0
        %530 = vmatpush1.msra.mxu0 0.0
        %531 = vmatprep.subr.mxu0 0.0
        %532 = vmatpush1.msra.mxu0 0.0
        %533 = vmatprep.subr.mxu0 0.0
        %534 = vmatpush1.msra.mxu0 0.0
        %535 = vmatprep.subr.mxu0 0.0
        %536 = vmatpush1.msra.mxu0 0.0
        %537 = vmatprep.subr.mxu0 0.0
        %538 = vmatpush1.msra.mxu0 0.0
        %539 = vmatprep.subr.mxu0 0.0
        %540 = vmatpush1.msra.mxu0 0.0
        %541 = vmatprep.subr.mxu0 0.0
        %542 = vmatpush1.msra.mxu0 0.0
        %543 = vmatprep.subr.mxu0 0.0
        %544 = vmatpush1.msra.mxu0 0.0
        %545 = vmatprep.subr.mxu0 0.0
        %546 = vmatpush1.msra.mxu0 0.0
        %547 = vmatprep.subr.mxu0 0.0
        %548 = vmatpush1.msra.mxu0 %v517
        %549 = vmatprep.subr.mxu0 0.0
        %550 = vmatpush1.msra.mxu0 %v509
        %551 = vmatprep.subr.mxu0 0.0
        %552 = vmatpush2.msra.mxu0 0.0
        %553 = vmatprep.subr.mxu0 0.0
        %554 = vmatpush2.msra.mxu0 0.0
        %555 = vmatprep.subr.mxu0 0.0
        %556 = vmatpush2.msra.mxu0 0.0
        %557 = vmatprep.subr.mxu0 0.0
        %558 = vmatpush2.msra.mxu0 0.0
        %559 = vmatprep.subr.mxu0 0.0
        %560 = vmatpush2.msra.mxu0 0.0
        %561 = vmatprep.subr.mxu0 0.0
        %562 = vmatpush2.msra.mxu0 0.0
        %563 = vmatprep.subr.mxu0 0.0
        %564 = vmatpush2.msra.mxu0 0.0
        %565 = vmatprep.subr.mxu0 0.0
        %566 = vmatpush2.msra.mxu0 0.0
        %567 = vmatprep.subr.mxu0 0.0
        %568 = vmatpush2.msra.mxu0 0.0
        %569 = vmatprep.subr.mxu0 0.0
        %570 = vmatpush2.msra.mxu0 0.0
        %571 = vmatprep.subr.mxu0 0.0
        %572 = vmatpush2.msra.mxu0 0.0
        %573 = vmatprep.subr.mxu0 0.0
        %574 = vmatpush2.msra.mxu0 0.0
        %575 = vmatprep.subr.mxu0 0.0
        %576 = vmatpush2.msra.mxu0 0.0
        %577 = vmatprep.subr.mxu0 0.0
        %578 = vmatpush2.msra.mxu0 0.0
        %579 = vmatprep.subr.mxu0 0.0
        %580 = vmatpush2.msra.mxu0 0.0
        %581 = vmatprep.subr.mxu0 0.0
        %582 = vmatpush2.msra.mxu0 0.0
        %583 = vmatprep.mubr.f32.mxu0 0.0
        %584 = vmatmul.mubr.f32.gmra.mxu0 %v513
        %v585 = vpop.f32.mrf.mxu0
        %v586 = vadd.f32 0.0, %v585
        %v587 = vpop.f32.mrf.mxu0
        %588 = vdwg.mxu0
        %vm589 = vcmask 195584
        %v591 = vsel %vm589, %v504, 0
        %593 = vmatprep.subr.mxu0 0.0
        %594 = vmatpush1.msra.mxu0 0.0
        %595 = vmatprep.subr.mxu0 0.0
        %596 = vmatpush1.msra.mxu0 0.0
        %597 = vmatprep.subr.mxu0 0.0
        %598 = vmatpush1.msra.mxu0 0.0
        %599 = vmatprep.subr.mxu0 0.0
        %600 = vmatpush1.msra.mxu0 0.0
        %601 = vmatprep.subr.mxu0 0.0
        %602 = vmatpush1.msra.mxu0 0.0
        %603 = vmatprep.subr.mxu0 0.0
        %604 = vmatpush1.msra.mxu0 0.0
        %605 = vmatprep.subr.mxu0 0.0
        %606 = vmatpush1.msra.mxu0 0.0
        %607 = vmatprep.subr.mxu0 0.0
        %608 = vmatpush1.msra.mxu0 0.0
        %609 = vmatprep.subr.mxu0 0.0
        %610 = vmatpush1.msra.mxu0 0.0
        %611 = vmatprep.subr.mxu0 0.0
        %612 = vmatpush1.msra.mxu0 0.0
        %613 = vmatprep.subr.mxu0 0.0
        %614 = vmatpush1.msra.mxu0 0.0
        %615 = vmatprep.subr.mxu0 0.0
        %616 = vmatpush1.msra.mxu0 0.0
        %617 = vmatprep.subr.mxu0 0.0
        %618 = vmatpush1.msra.mxu0 0.0
        %619 = vmatprep.subr.mxu0 0.0
        %620 = vmatpush1.msra.mxu0 %v508
        %621 = vmatprep.subr.mxu0 0.0
        %622 = vmatpush1.msra.mxu0 %v507
        %623 = vmatprep.subr.mxu0 0.0
        %624 = vmatpush1.msra.mxu0 %v506
        %625 = vmatprep.subr.mxu0 0.0
        %626 = vmatpush2.msra.mxu0 0.0
        %627 = vmatprep.subr.mxu0 0.0
        %628 = vmatpush2.msra.mxu0 0.0
        %629 = vmatprep.subr.mxu0 0.0
        %630 = vmatpush2.msra.mxu0 0.0
        %631 = vmatprep.subr.mxu0 0.0
        %632 = vmatpush2.msra.mxu0 0.0
        %633 = vmatprep.subr.mxu0 0.0
        %634 = vmatpush2.msra.mxu0 0.0
        %635 = vmatprep.subr.mxu0 0.0
        %636 = vmatpush2.msra.mxu0 0.0
        %637 = vmatprep.subr.mxu0 0.0
        %638 = vmatpush2.msra.mxu0 0.0
        %639 = vmatprep.subr.mxu0 0.0
        %640 = vmatpush2.msra.mxu0 0.0
        %641 = vmatprep.subr.mxu0 0.0
        %642 = vmatpush2.msra.mxu0 0.0
        %643 = vmatprep.subr.mxu0 0.0
        %644 = vmatpush2.msra.mxu0 0.0
        %645 = vmatprep.subr.mxu0 0.0
        %646 = vmatpush2.msra.mxu0 0.0
        %647 = vmatprep.subr.mxu0 0.0
        %648 = vmatpush2.msra.mxu0 0.0
        %649 = vmatprep.subr.mxu0 0.0
        %650 = vmatpush2.msra.mxu0 0.0
        %651 = vmatprep.subr.mxu0 0.0
        %652 = vmatpush2.msra.mxu0 0.0
        %653 = vmatprep.subr.mxu0 0.0
        %654 = vmatpush2.msra.mxu0 0.0
        %655 = vmatprep.subr.mxu0 0.0
        %656 = vmatpush2.msra.mxu0 0.0
        %657 = vmatprep.mubr.f32.mxu0 0.0
        %658 = vmatmul.mubr.f32.gmra.mxu0 %v591
        %v659 = vpop.f32.mrf.mxu0
        %v660 = vadd.f32 %v586, %v659
        %v661 = vpop.f32.mrf.mxu0
        %662 = vdwg.mxu0
        %v663 = vld [vmem:[%s490] sm:$0x1]
        %v665 = vlaneseq
        %v666 = vshrl.u32 %v665, 7
        %v667 = vsub.s32 0, %v666
        %v668 = vrot.slane %v663, %v667
        %v670 = vadd.f32 %v660, %v668
        %v671 = vmax.f32 %v670, 0.0
        %v672 = vld [vmem:[%s432] sm:$0xff]
        %v673 = vld [vmem:[%s432 + $0x8] sm:$0xff]
        %v674 = vld [vmem:[%s432 + $0x10] sm:$0xff]
        %v675 = vld [vmem:[%s432 + $0x18] sm:$0xff]
        %v676 = vld [vmem:[%s432 + $0x20] sm:$0xff]
        %v677 = vld [vmem:[%s432 + $0x28] sm:$0xff]
        %v678 = vld [vmem:[%s432 + $0x30] sm:$0xff]
        %v679 = vld [vmem:[%s432 + $0x38] sm:$0xff]
        %v680 = vld [vmem:[%s432 + $0x40] sm:$0xff]
        %v681 = vld [vmem:[%s432 + $0x48] sm:$0xff]
        %v682 = vld [vmem:[%s432 + $0x50] sm:$0xff]
        %v683 = vld [vmem:[%s432 + $0x58] sm:$0xff]
        %v684 = vld [vmem:[%s432 + $0x60] sm:$0xff]
        %v685 = vld [vmem:[%s432 + $0x68] sm:$0xff]
        %v686 = vld [vmem:[%s432 + $0x70] sm:$0xff]
        %v687 = vld [vmem:[%s432 + $0x78] sm:$0xff]
        %v688 = vld [vmem:[%s493] sm:$0x1]
        %v690 = vlaneseq
        %v691 = vshrl.u32 %v690, 7
        %v692 = vsub.s32 0, %v691
        %v693 = vrot.slane %v688, %v692
        %695 = vmatprep.subr.mxu0 0.0
        %696 = vmatpush1.msra.mxu0 %v687
        %697 = vmatprep.subr.mxu0 0.0
        %698 = vmatpush1.msra.mxu0 %v686
        %699 = vmatprep.subr.mxu0 0.0
        %700 = vmatpush1.msra.mxu0 %v685
        %701 = vmatprep.subr.mxu0 0.0
        %702 = vmatpush1.msra.mxu0 %v684
        %703 = vmatprep.subr.mxu0 0.0
        %704 = vmatpush1.msra.mxu0 %v683
        %705 = vmatprep.subr.mxu0 0.0
        %706 = vmatpush1.msra.mxu0 %v682
        %707 = vmatprep.subr.mxu0 0.0
        %708 = vmatpush1.msra.mxu0 %v681
        %709 = vmatprep.subr.mxu0 0.0
        %710 = vmatpush1.msra.mxu0 %v680
        %711 = vmatprep.subr.mxu0 0.0
        %712 = vmatpush1.msra.mxu0 %v679
        %713 = vmatprep.subr.mxu0 0.0
        %714 = vmatpush1.msra.mxu0 %v678
        %715 = vmatprep.subr.mxu0 0.0
        %716 = vmatpush1.msra.mxu0 %v677
        %717 = vmatprep.subr.mxu0 0.0
        %718 = vmatpush1.msra.mxu0 %v676
        %719 = vmatprep.subr.mxu0 0.0
        %720 = vmatpush1.msra.mxu0 %v675
        %721 = vmatprep.subr.mxu0 0.0
        %722 = vmatpush1.msra.mxu0 %v674
        %723 = vmatprep.subr.mxu0 0.0
        %724 = vmatpush1.msra.mxu0 %v673
        %725 = vmatprep.subr.mxu0 0.0
        %726 = vmatpush1.msra.mxu0 %v672
        %727 = vmatprep.subr.mxu0 0.0
        %728 = vmatpush2.msra.mxu0 0.0
        %729 = vmatprep.subr.mxu0 0.0
        %730 = vmatpush2.msra.mxu0 0.0
        %731 = vmatprep.subr.mxu0 0.0
        %732 = vmatpush2.msra.mxu0 0.0
        %733 = vmatprep.subr.mxu0 0.0
        %734 = vmatpush2.msra.mxu0 0.0
        %735 = vmatprep.subr.mxu0 0.0
        %736 = vmatpush2.msra.mxu0 0.0
        %737 = vmatprep.subr.mxu0 0.0
        %738 = vmatpush2.msra.mxu0 0.0
        %739 = vmatprep.subr.mxu0 0.0
        %740 = vmatpush2.msra.mxu0 0.0
        %741 = vmatprep.subr.mxu0 0.0
        %742 = vmatpush2.msra.mxu0 0.0
        %743 = vmatprep.subr.mxu0 0.0
        %744 = vmatpush2.msra.mxu0 0.0
        %745 = vmatprep.subr.mxu0 0.0
        %746 = vmatpush2.msra.mxu0 0.0
        %747 = vmatprep.subr.mxu0 0.0
        %748 = vmatpush2.msra.mxu0 0.0
        %749 = vmatprep.subr.mxu0 0.0
        %750 = vmatpush2.msra.mxu0 0.0
        %751 = vmatprep.subr.mxu0 0.0
        %752 = vmatpush2.msra.mxu0 0.0
        %753 = vmatprep.subr.mxu0 0.0
        %754 = vmatpush2.msra.mxu0 0.0
        %755 = vmatprep.subr.mxu0 0.0
        %756 = vmatpush2.msra.mxu0 0.0
        %757 = vmatprep.subr.mxu0 0.0
        %758 = vmatpush2.msra.mxu0 0.0
        %759 = vmatprep.mubr.f32.mxu0 0.0
        %760 = vmatmul.mubr.f32.gmra.mxu0 %v671
        %v761 = vpop.f32.mrf.mxu0
        %v762 = vadd.f32 %v693, %v761
        %v763 = vpop.f32.mrf.mxu0
        %764 = vdwg.mxu0
        %v765 = vmax.f32 %v762, 0.0
        %v766 = vld [vmem:[%s496] sm:$0x1]
        %v768 = vlaneseq
        %v769 = vshrl.u32 %v768, 7
        %v770 = vsub.s32 0, %v769
        %v771 = vrot.slane %v766, %v770
        %v773 = vmul.f32 %v765, %v771
        %774 = vadd.xlane.f32.xlu0 %v773
        %v775 = vpop.xlane.xlu0 %774
        %v776 = vld [vmem:[%s499] sm:$0x1]
        %v778 = vlaneseq
        %v779 = vshrl.u32 %v778, 7
        %v780 = vsub.s32 0, %v779
        %v781 = vrot.slane %v776, %v780
        %v783 = vadd.f32 %v775, %v781
        %vm784 = vcmask 7168
        %785 = vst.msk [vmem:[%s503] sm:$0xff] %vm784, %v783
        %p786 = scmp.lt.s32.totalorder %s22, 2
        %s787 = scalar_select %p786, %s22, 2
        %s788 = smul.addr %s787, 8
        %s789 = scalar_lea.vmem %s9, %s788
        // Predicated region
        $region77: #{tpu_custom_call.1} parent=55 // pred_check
          %p790 = pneg %p264
        $region78: #{tpu_custom_call.1} parent=55 // pred_check_branch
          %792 = sbr.rel (%p790) target = $region80
        $region79: #{tpu_custom_call.1} parent=55 // pred_region
          _
        $region80: #{tpu_custom_call.1} parent=55 // pred_fallthru
          _
      $region56: #{tpu_custom_call.1} parent=5 // pred_fallthru
        _
      %p793 = scmp.le.s32.totalorder 2, %s17
      // Predicated region
      $region81: #{tpu_custom_call.1} parent=5 // pred_check
        %p794 = pneg %p793
      $region82: #{tpu_custom_call.1} parent=5 // pred_check_branch
        %796 = sbr.rel (%p794) target = $region84
      $region83: #{tpu_custom_call.1} parent=5 // pred_region
        %s797 = ssub.s32 %s17, 2
        // Predicated region
        $region85: #{tpu_custom_call.1} parent=83 // pred_check
          %p798 = pneg %p270
        $region86: #{tpu_custom_call.1} parent=83 // pred_check_branch
          %800 = sbr.rel (%p798) target = $region88
        $region87: #{tpu_custom_call.1} parent=83 // pred_region
          %p801 = scmp.lt.s32.totalorder %s23, 2
          %s802 = scalar_select %p801, %s23, 2
          %s803 = smul.addr %s802, 8
          %s804 = scalar_lea.vmem %s9, %s803
        $region88: #{tpu_custom_call.1} parent=83 // pred_fallthru
          _
      $region84: #{tpu_custom_call.1} parent=5 // pred_fallthru
        _
    $region6: #{tpu_custom_call.1} parent=1 // loop_footer
      %s21 = sadd.s32 1, %s17
    $region7: #{tpu_custom_call.1} parent=1 // loop_footer_branch
      %16 = sbr.rel target = $region3
    $region8: #{tpu_custom_call.1} parent=1 // loop_exit
      _
    %805 = vsyncpa [#allocation3], 1
    %s806 = scalar_lea.sflag [#allocation3], 1
    %807 = vsyncpa %s806, 1
    %808 = vsyncpa [#allocation5], 1

</llo_original>
